<compile_context>
chip_gen: v7x
topology: tpu7x:2x2x1
jax: 0.10.0
libtpu: 0.0.40
codegen_flags: <defaults>
</compile_context>

<pallas_src>
import jax
import jax.numpy as jnp
from jax import lax
from jax.experimental import pallas as pl
from jax.experimental.pallas import tpu as pltpu
import numpy as np


# ---------------------------------------------------------------------------
# Config (mirrors ContrastiveConfig defaults)
# ---------------------------------------------------------------------------
TEMPERATURE = 0.1
ALIGNMENT_WEIGHT = 1.0
UNIFORMITY_WEIGHT = 0.5
SIMILARITY_SCALE = 1.0
EPS = 1e-8

# Row-tile size: 128 matches the v5e MXU and keeps the v7x VMEM budget modest;
# on v6e (128 MiB VMEM) 256-512 amortizes per-step overhead better.
ROW_TILE = 128


# ---------------------------------------------------------------------------
# Pallas kernel (one grid step = one row tile of the batch)
# ---------------------------------------------------------------------------
def _make_kernel(total_b: int, tb: int, bp: int):
    """Kernel body with static batch size / tile size / padded size baked in."""
    inv_b = 1.0 / float(total_b)
    inv_temp = 1.0 / TEMPERATURE
    needs_mask = bp > total_b  # only when rows were padded to a tile multiple

    def kernel(en_rows_ref, en_all_ref, a_ref, drow_ref, dcol_ref,
               align_ref, unif_ref):
        # en_rows: (TB,D) bf16   en_all: (B,D) bf16 (grid-invariant keys)
        # a:       (TB,1) f32    exact  (1/T)*sum_j labels_ij*sims_ij  (wrapper)
        # drow:    (TB,1) f32    ||en_i||^2        dcol: (1,B) f32  ||en_j||^2
        # align_ref / unif_ref: (1,1,1) f32 per-tile partial sums.

        # ---- the only O(TB*B*D) work: a single bf16 MXU pass, contracting
        #      dim 1 of BOTH operands (no transpose), f32 accumulation.
        sims = lax.dot_general(
            en_rows_ref[...], en_all_ref[...], (((1,), (1,)), ((), ())),
            preferred_element_type=jnp.float32)                     # (TB,B)

        # ---- alignment: per_row = sum_j labels*log_probs
        #                        = a_i - (max_i(logits) + lse_i)   (sum labels == 1)
        m = jnp.max(sims, axis=1, keepdims=True)                    # (TB,1) XLU
        es = jnp.exp((sims - m) * inv_temp)                         # (TB,B) EUP #1
        lse = jnp.log(jnp.sum(es, axis=1, keepdims=True))           # (TB,1)
        per_row = a_ref[...] - (m * inv_temp + lse)                 # (TB,1)

        # ---- uniformity partial: sum_{i in tile, j in batch} exp(-||en_i-en_j||^2)
        #      exponent folded (exp(2*s_ij - d_i - d_j)) and row-summed on
        #      VPU/XLU — no MXU matvec.  Diagonal (== B) removed in the wrapper.
        eu = jnp.exp(2.0 * sims - drow_ref[...] - dcol_ref[...])    # (TB,B) EUP #2
        u_row = jnp.sum(eu, axis=1, keepdims=True)                  # (TB,1)

        if needs_mask:
            # Padded rows (zero embeddings) are finite but must not contribute.
            row0 = pl.program_id(0) * tb
            rows = row0 + lax.broadcasted_iota(jnp.int32, (tb, 1), 0)
            valid = (rows < total_b).astype(jnp.float32)            # (TB,1)
            per_row = per_row * valid
            u_row = u_row * valid

        align_ref[0] = -jnp.sum(per_row, axis=0, keepdims=True) * inv_b   # (1,1)
        unif_ref[0] = jnp.sum(u_row, axis=0, keepdims=True)               # (1,1)

    return kernel


# ---------------------------------------------------------------------------
# Wrapper: one-shot f32 prologue (hoisted per perf review) + tiled pallas_call
# ---------------------------------------------------------------------------
@jax.jit
def entity_contrastive_loss(embeddings, entity_type_ids, similarity_matrix):
    """embeddings: [B,D] f32, entity_type_ids: [B] i32, similarity_matrix: [T,T] f32."""
    e = embeddings.astype(jnp.float32)
    sim = similarity_matrix.astype(jnp.float32)
    ids = entity_type_ids.astype(jnp.int32)

    b, dim = e.shape
    n_types = sim.shape[0]
    inv_temp = 1.0 / TEMPERATURE

    # ---- F.normalize(p=2, dim=1, eps): x / max(||x||, eps), computed ONCE.
    norm2 = jnp.sum(e * e, axis=1, keepdims=True)                   # (B,1)
    inv_n = jnp.minimum(lax.rsqrt(norm2), 1.0 / EPS)
    en = e * inv_n                                                  # (B,D) f32
    d_sq = norm2 * inv_n * inv_n                                    # ||en||^2, (B,1)
    en_b16 = en.astype(jnp.bfloat16)                                # MXU feed (bf16)

    # ---- exact-f32 soft-target alignment numerator (labels depend only on
    #      entity types, so they collapse to a (B,T) table + per-type sums):
    #        a_i = (1/T) * sum_j labels_ij * sims_ij
    #            = (1/T) * sum_t wnorm[i,t] * (en_i . typesum_t)
    oh = (ids[:, None] == jnp.arange(n_types, dtype=jnp.int32)[None, :]
          ).astype(jnp.float32)                                     # (B,T)
    counts = jnp.sum(oh, axis=0)                                    # (T,)
    c = SIMILARITY_SCALE / TEMPERATURE
    w = jnp.exp(c * sim[ids])                                       # (B,T)
    z = jnp.sum(w * counts[None, :], axis=1, keepdims=True)         # (B,1)
    wnorm = w / z                                                   # sum_t wnorm*count == 1
    typesum = jnp.dot(oh.T, en, precision=lax.Precision.HIGHEST)    # (T,D) f32
    sdot = jnp.dot(en, typesum.T, precision=lax.Precision.HIGHEST)  # (B,T) f32
    a_row = inv_temp * jnp.sum(wnorm * sdot, axis=1, keepdims=True) # (B,1) f32

    # ---- row tiling (keys keep a full-extent block, so only rows get padded).
    if b <= 256:
        tb, g, bp = b, 1, b
    else:
        tb = ROW_TILE
        g = (b + tb - 1) // tb
        bp = g * tb

    pad = bp - b
    if pad:
        en_rows = jnp.pad(en_b16, ((0, pad), (0, 0)))
        a_rows = jnp.pad(a_row, ((0, pad), (0, 0)))
        d_rows = jnp.pad(d_sq, ((0, pad), (0, 0)))
    else:
        en_rows, a_rows, d_rows = en_b16, a_row, d_sq
    d_cols = d_sq.reshape(1, b)                                     # lane-dense

    kernel = _make_kernel(total_b=b, tb=tb, bp=bp)

    # VMEM budget: bf16 keys (double-buffered), bf16 row tile, plus the f32
    # (TB,B) intermediates. Capped at 64 MiB (v7x-safe); raise on v5e/v6e.
    vmem_need = (2 * b * dim * 2 + 2 * tb * dim * 2 + 8 * tb * b * 4
                 + (1 << 21))
    vmem_limit = int(min(max(vmem_need, 16 * 1024 * 1024), 64 * 1024 * 1024))

    align_parts, unif_parts = pl.pallas_call(
        kernel,
        grid=(g,),
        in_specs=[
            pl.BlockSpec((tb, dim), lambda i: (i, 0)),     # en rows (bf16, padded)
            pl.BlockSpec((b, dim), lambda i: (0, 0)),      # en keys (bf16, invariant)
            pl.BlockSpec((tb, 1), lambda i: (i, 0)),       # a_row  (f32, exact)
            pl.BlockSpec((tb, 1), lambda i: (i, 0)),       # ||en||^2 (rows)
            pl.BlockSpec((1, b), lambda i: (0, 0)),        # ||en||^2 (cols, lane-dense)
        ],
        out_specs=(
            pl.BlockSpec((1, 1, 1), lambda i: (i, 0, 0)),
            pl.BlockSpec((1, 1, 1), lambda i: (i, 0, 0)),
        ),
        out_shape=(
            jax.ShapeDtypeStruct((g, 1, 1), jnp.float32),
            jax.ShapeDtypeStruct((g, 1, 1), jnp.float32),
        ),
        compiler_params=pltpu.CompilerParams(
            dimension_semantics=("parallel",),    # independent row tiles (megacore)
            vmem_limit_bytes=vmem_limit,
        ),
    )(en_rows, en_b16, a_rows, d_rows, d_cols)

    # Tiny final combine in plain JAX.
    alignment = jnp.sum(align_parts)              # == -mean_i sum_j labels*log_probs
    total = ALIGNMENT_WEIGHT * alignment
    if b >= 2:                                    # torch: uniformity == 0 when B < 2
        n_pairs = b * (b - 1) // 2
        raw = jnp.sum(unif_parts)                 # all ordered pairs incl. diag (== b)
        uniformity = (raw - b) / (2.0 * n_pairs)
        total = total + UNIFORMITY_WEIGHT * uniformity
    return total


# ---------------------------------------------------------------------------
# Pure-JAX reference (correctness sanity check)
# ---------------------------------------------------------------------------
def _reference_loss(embeddings, entity_type_ids, similarity_matrix):
    e = embeddings.astype(jnp.float32)
    norm = jnp.maximum(jnp.linalg.norm(e, axis=1, keepdims=True), EPS)
    en = e / norm
    sims = en @ en.T
    tgt = similarity_matrix[entity_type_ids[:, None], entity_type_ids[None, :]]
    tgt = tgt * SIMILARITY_SCALE

    labels = jax.nn.softmax(tgt / TEMPERATURE, axis=1)
    log_probs = jax.nn.log_softmax(sims / TEMPERATURE, axis=1)
    align = -jnp.mean(jnp.sum(labels * log_probs, axis=1))

    b = e.shape[0]
    diff = en[:, None, :] - en[None, :, :]
    d2 = jnp.sum(diff * diff, axis=-1)
    iu, ju = jnp.triu_indices(b, k=1)
    unif = jnp.mean(jnp.exp(-d2[iu, ju]))

    return ALIGNMENT_WEIGHT * align + UNIFORMITY_WEIGHT * unif


# ---------------------------------------------------------------------------
# Main
# ---------------------------------------------------------------------------
if __name__ == "__main__":
    B, D, N_TYPES = 8, 32, 5

    key = jax.random.PRNGKey(0)
    k_emb, k_ids = jax.random.split(key)

    embeddings = jax.random.normal(k_emb, (B, D), dtype=jnp.float32)
    entity_type_ids = jax.random.randint(k_ids, (B,), 0, N_TYPES, dtype=jnp.int32)

    # Deterministic "cached similarity matrix": 1.0 on the diagonal, smooth
    # symmetric decay off-diagonal (mimics similarity_manager.get_similarity).
    idx = jnp.arange(N_TYPES, dtype=jnp.float32)
    similarity_matrix = jnp.exp(-jnp.abs(idx[:, None] - idx[None, :]) / 2.0)

    loss = entity_contrastive_loss(embeddings, entity_type_ids, similarity_matrix)
    loss = jax.block_until_ready(loss)

    ref = jax.block_until_ready(
        _reference_loss(embeddings, entity_type_ids, similarity_matrix)
    )
    # Tolerance reflects the single-pass bf16 MXU similarity matmul (the
    # alignment label term is now exact f32 from the wrapper prologue).
    np.testing.assert_allclose(np.asarray(loss), np.asarray(ref), rtol=1e-2, atol=1e-2)

    print("KERNEL_OK")
</pallas_src>

<mosaic_0001>
module attributes {stable_mosaic.version = 11 : i64} {
  func.func @kernel(%arg0: i32, %arg1: memref<8x32xbf16, #tpu.memory_space<vmem>>, %arg2: memref<8x32xbf16, #tpu.memory_space<vmem>>, %arg3: memref<8x1xf32, #tpu.memory_space<vmem>>, %arg4: memref<8x1xf32, #tpu.memory_space<vmem>>, %arg5: memref<1x8xf32, #tpu.memory_space<vmem>>, %arg6: memref<1x1x1xf32, #tpu.memory_space<vmem>>, %arg7: memref<1x1x1xf32, #tpu.memory_space<vmem>>) attributes {dimension_semantics = [#tpu.dimension_semantics<parallel>], iteration_bounds = array<i64: 1>, scalar_prefetch = 0 : i64, scratch_operands = 0 : i64, tpu.core_type = #tpu.core_type<tc>, window_params = [{transform_indices = @transform_0, window_bounds = array<i64: 8, 32>}, {pipeline_mode = #tpu.pipeline_mode<synchronous>, transform_indices = @transform_1, window_bounds = array<i64: 8, 32>}, {transform_indices = @transform_2, window_bounds = array<i64: 8, 1>}, {transform_indices = @transform_3, window_bounds = array<i64: 8, 1>}, {pipeline_mode = #tpu.pipeline_mode<synchronous>, transform_indices = @transform_4, window_bounds = array<i64: 1, 8>}, {transform_indices = @transform_5, window_bounds = array<i64: 1, 1, 1>}, {transform_indices = @transform_6, window_bounds = array<i64: 1, 1, 1>}]} {
    %c0 = arith.constant 0 : index
    %c0_0 = arith.constant 0 : index
    %0 = vector.load %arg1[%c0, %c0_0] : memref<8x32xbf16, #tpu.memory_space<vmem>>, vector<8x32xbf16>
    %c0_1 = arith.constant 0 : index
    %c0_2 = arith.constant 0 : index
    %1 = vector.load %arg2[%c0_1, %c0_2] : memref<8x32xbf16, #tpu.memory_space<vmem>>, vector<8x32xbf16>
    %cst = arith.constant dense<0.000000e+00> : vector<8x8xf32>
    %2 = tpu.matmul %0, %1, %cst {dimension_numbers = #tpu.dot_dimension_numbers<[1], [1], [0], [0], [0, 0, 1, 0], [], []>} : vector<8x32xbf16>, vector<8x32xbf16>, vector<8x8xf32> -> vector<8x8xf32>
    %cst_3 = arith.constant dense<0xFF800000> : vector<8xf32>
    %3 = vector.multi_reduction <maximumf>, %2, %cst_3 [1] : vector<8x8xf32> to vector<8xf32>
    %4 = vector.shape_cast %3 : vector<8xf32> to vector<8x1xf32>
    %5 = vector.broadcast %4 : vector<8x1xf32> to vector<8x8xf32>
    %6 = arith.subf %2, %5 : vector<8x8xf32>
    %cst_4 = arith.constant 1.000000e+01 : f32
    %7 = vector.broadcast %cst_4 : f32 to vector<8x8xf32>
    %8 = arith.mulf %6, %7 : vector<8x8xf32>
    %9 = math.exp %8 : vector<8x8xf32>
    %cst_5 = arith.constant dense<0.000000e+00> : vector<8xf32>
    %10 = vector.multi_reduction <add>, %9, %cst_5 [1] : vector<8x8xf32> to vector<8xf32>
    %11 = vector.shape_cast %10 : vector<8xf32> to vector<8x1xf32>
    %12 = math.log %11 : vector<8x1xf32>
    %c0_6 = arith.constant 0 : index
    %c0_7 = arith.constant 0 : index
    %13 = vector.load %arg3[%c0_6, %c0_7] : memref<8x1xf32, #tpu.memory_space<vmem>>, vector<8x1xf32>
    %cst_8 = arith.constant 1.000000e+01 : f32
    %14 = vector.broadcast %cst_8 : f32 to vector<8x1xf32>
    %15 = arith.mulf %4, %14 : vector<8x1xf32>
    %16 = arith.addf %15, %12 : vector<8x1xf32>
    %17 = arith.subf %13, %16 : vector<8x1xf32>
    %cst_9 = arith.constant 2.000000e+00 : f32
    %18 = vector.broadcast %cst_9 : f32 to vector<8x8xf32>
    %19 = arith.mulf %18, %2 : vector<8x8xf32>
    %c0_10 = arith.constant 0 : index
    %c0_11 = arith.constant 0 : index
    %20 = vector.load %arg4[%c0_10, %c0_11] : memref<8x1xf32, #tpu.memory_space<vmem>>, vector<8x1xf32>
    %21 = vector.broadcast %20 : vector<8x1xf32> to vector<8x8xf32>
    %22 = arith.subf %19, %21 : vector<8x8xf32>
    %c0_12 = arith.constant 0 : index
    %c0_13 = arith.constant 0 : index
    %23 = vector.load %arg5[%c0_12, %c0_13] : memref<1x8xf32, #tpu.memory_space<vmem>>, vector<1x8xf32>
    %24 = vector.broadcast %23 : vector<1x8xf32> to vector<8x8xf32>
    %25 = arith.subf %22, %24 : vector<8x8xf32>
    %26 = math.exp %25 : vector<8x8xf32>
    %cst_14 = arith.constant dense<0.000000e+00> : vector<8xf32>
    %27 = vector.multi_reduction <add>, %26, %cst_14 [1] : vector<8x8xf32> to vector<8xf32>
    %28 = vector.shape_cast %27 : vector<8xf32> to vector<8x1xf32>
    %cst_15 = arith.constant dense<0.000000e+00> : vector<1xf32>
    %29 = vector.multi_reduction <add>, %17, %cst_15 [0] : vector<8x1xf32> to vector<1xf32>
    %30 = vector.shape_cast %29 : vector<1xf32> to vector<1x1xf32>
    %cst_16 = arith.constant 0.000000e+00 : f32
    %31 = vector.broadcast %cst_16 : f32 to vector<1x1xf32>
    %32 = arith.subf %31, %30 : vector<1x1xf32>
    %cst_17 = arith.constant 1.250000e-01 : f32
    %33 = vector.broadcast %cst_17 : f32 to vector<1x1xf32>
    %34 = arith.mulf %32, %33 : vector<1x1xf32>
    %c0_18 = arith.constant 0 : index
    %c0_19 = arith.constant 0 : index
    %c0_20 = arith.constant 0 : index
    %35 = vector.load %arg6[%c0_18, %c0_19, %c0_20] : memref<1x1x1xf32, #tpu.memory_space<vmem>>, vector<1x1x1xf32>
    %36 = vector.shape_cast %35 : vector<1x1x1xf32> to vector<1x1xf32>
    %37 = vector.shape_cast %34 : vector<1x1xf32> to vector<1x1x1xf32>
    tpu.vector_store %arg6[%c0_18, %c0_19, %c0_20], %37 {strides = array<i32>} : memref<1x1x1xf32, #tpu.memory_space<vmem>>, vector<1x1x1xf32>,
    %cst_21 = arith.constant dense<0.000000e+00> : vector<1xf32>
    %38 = vector.multi_reduction <add>, %28, %cst_21 [0] : vector<8x1xf32> to vector<1xf32>
    %39 = vector.shape_cast %38 : vector<1xf32> to vector<1x1xf32>
    %c0_22 = arith.constant 0 : index
    %c0_23 = arith.constant 0 : index
    %c0_24 = arith.constant 0 : index
    %40 = vector.load %arg7[%c0_22, %c0_23, %c0_24] : memref<1x1x1xf32, #tpu.memory_space<vmem>>, vector<1x1x1xf32>
    %41 = vector.shape_cast %40 : vector<1x1x1xf32> to vector<1x1xf32>
    %42 = vector.shape_cast %39 : vector<1x1xf32> to vector<1x1x1xf32>
    tpu.vector_store %arg7[%c0_22, %c0_23, %c0_24], %42 {strides = array<i32>} : memref<1x1x1xf32, #tpu.memory_space<vmem>>, vector<1x1x1xf32>,
    return
  }
  func.func @transform_0(%arg0: i32) -> (i32, i32) {
    %c0_i32 = arith.constant 0 : i32
    %c0_i32_0 = arith.constant 0 : i32
    return %arg0, %c0_i32 : i32, i32
  }
  func.func @transform_1(%arg0: i32) -> (i32, i32) {
    %c0_i32 = arith.constant 0 : i32
    %c0_i32_0 = arith.constant 0 : i32
    %c0_i32_1 = arith.constant 0 : i32
    return %c0_i32, %c0_i32_0 : i32, i32
  }
  func.func @transform_2(%arg0: i32) -> (i32, i32) {
    %c0_i32 = arith.constant 0 : i32
    %c0_i32_0 = arith.constant 0 : i32
    return %arg0, %c0_i32 : i32, i32
  }
  func.func @transform_3(%arg0: i32) -> (i32, i32) {
    %c0_i32 = arith.constant 0 : i32
    %c0_i32_0 = arith.constant 0 : i32
    return %arg0, %c0_i32 : i32, i32
  }
  func.func @transform_4(%arg0: i32) -> (i32, i32) {
    %c0_i32 = arith.constant 0 : i32
    %c0_i32_0 = arith.constant 0 : i32
    %c0_i32_1 = arith.constant 0 : i32
    return %c0_i32, %c0_i32_0 : i32, i32
  }
  func.func @transform_5(%arg0: i32) -> (i32, i32, i32) {
    %c0_i32 = arith.constant 0 : i32
    %c0_i32_0 = arith.constant 0 : i32
    %c0_i32_1 = arith.constant 0 : i32
    return %arg0, %c0_i32, %c0_i32_0 : i32, i32, i32
  }
  func.func @transform_6(%arg0: i32) -> (i32, i32, i32) {
    %c0_i32 = arith.constant 0 : i32
    %c0_i32_0 = arith.constant 0 : i32
    %c0_i32_1 = arith.constant 0 : i32
    return %arg0, %c0_i32, %c0_i32_0 : i32, i32, i32
  }
}

</mosaic_0001>

<llo_original>
// kernel: entity_contrastive_loss.1
$region0: #{entity_contrastive_loss.1}
  #allocation0 [shape = 'u32[]', space=smem, size = 0x4, offset = 0x4, fixed_abs, tag = 'smem constant byte address 0x4 - core index']
  #allocation1 [shape = 'u32[144,128]{1,0:T(1,128)}', space=vmem, size = 0x12000, scoped, tag = 'internal scratch']
  %s0 = inlined_call_operand.vmem [shape: bf16[8,32], index: 0, kind: input, shape index: {}, may-alias: {0,1}]
  %s1 = inlined_call_operand.vmem [shape: bf16[8,32], index: 1, kind: input, shape index: {}, may-alias: {0,1}]
  %s2 = inlined_call_operand.vmem [shape: f32[8,1], index: 2, kind: input, shape index: {}]
  %s3 = inlined_call_operand.vmem [shape: f32[8,1], index: 3, kind: input, shape index: {}]
  %s4 = inlined_call_operand.vmem [shape: f32[1,8], index: 4, kind: input, shape index: {}]
  %s5 = inlined_call_operand.hbm [shape: f32[1,1,1], index: 5, kind: output, shape index: {0}]
  %s6 = inlined_call_operand.hbm [shape: f32[1,1,1], index: 6, kind: output, shape index: {1}]
  %7 = xla_tuple %s5, %s6
  %s8 = sld [smem:[#allocation0]]
  $region38: #{entity_contrastive_loss.1} parent=0
    _
  %s10 = ssub.s32 1, %s8
  %s11 = scalar_select 0, %s10, %s8
  $region1: #{entity_contrastive_loss.1} parent=0
    #allocation2 [shape = 'u8[512]{0}', space=vmem, size = 0x400, scoped, tag = 'output window, operand 0, single buffered']
    #allocation3 [shape = 's32[1]{0}', space=sflag, size = 0x4, scoped, tag = 'scoped memory for entity_contrastive_loss.1']
    #allocation4 [shape = 'u8[512]{0}', space=vmem, size = 0x400, scoped, tag = 'output window, operand 1, single buffered']
    #allocation5 [shape = 's32[1]{0}', space=sflag, size = 0x4, scoped, tag = 'scoped memory for entity_contrastive_loss.1']
    %12 = vsyncpa [#allocation3], 0
    %13 = vsyncpa [#allocation5], 0
    // Predicated region
    $region2: #{entity_contrastive_loss.1} parent=1 // pred_check
      _
    $region3: #{entity_contrastive_loss.1} parent=1 // pred_check_branch
      %15 = sbr.rel (0) target = $region5
    $region4: #{entity_contrastive_loss.1} parent=1 // pred_region
      _
    $region5: #{entity_contrastive_loss.1} parent=1 // pred_fallthru
      _
    // Predicated region
    $region6: #{entity_contrastive_loss.1} parent=1 // pred_check
      _
    $region7: #{entity_contrastive_loss.1} parent=1 // pred_check_branch
      %17 = sbr.rel (0) target = $region9
    $region8: #{entity_contrastive_loss.1} parent=1 // pred_region
      _
    $region9: #{entity_contrastive_loss.1} parent=1 // pred_fallthru
      _
    // Predicated region
    $region10: #{entity_contrastive_loss.1} parent=1 // pred_check
      _
    $region11: #{entity_contrastive_loss.1} parent=1 // pred_check_branch
      %19 = sbr.rel (0) target = $region13
    $region12: #{entity_contrastive_loss.1} parent=1 // pred_region
      _
    $region13: #{entity_contrastive_loss.1} parent=1 // pred_fallthru
      _
    // Predicated region
    $region14: #{entity_contrastive_loss.1} parent=1 // pred_check
      _
    $region15: #{entity_contrastive_loss.1} parent=1 // pred_check_branch
      %21 = sbr.rel (0) target = $region17
    $region16: #{entity_contrastive_loss.1} parent=1 // pred_region
      _
    $region17: #{entity_contrastive_loss.1} parent=1 // pred_fallthru
      _
    // Predicated region
    $region18: #{entity_contrastive_loss.1} parent=1 // pred_check
      _
    $region19: #{entity_contrastive_loss.1} parent=1 // pred_check_branch
      %23 = sbr.rel (0) target = $region21
    $region20: #{entity_contrastive_loss.1} parent=1 // pred_region
      _
    $region21: #{entity_contrastive_loss.1} parent=1 // pred_fallthru
      _
    %v25 = vld [vmem:[%s0] sm:$0xf]
    %v26 = vld [vmem:[%s1] sm:$0xf]
    %vm27 = vcmask 261120
    %v29 = vsel %vm27, %v25, 0
    %v32 = vsel %vm27, %v26, 0
    %34 = vmatprep.subr.bf16.mxu0 0
    %35 = vmatpush1.bf16.xpose.msra.mxu0 %v32
    %36 = vmatprep.subr.bf16.mxu0 0
    %37 = vmatpush1.bf16.xpose.msra.mxu0 0
    %38 = vmatprep.subr.bf16.mxu0 0
    %39 = vmatpush1.bf16.xpose.msra.mxu0 0
    %40 = vmatprep.subr.bf16.mxu0 0
    %41 = vmatpush1.bf16.xpose.msra.mxu0 0
    %42 = vmatprep.subr.bf16.mxu0 0
    %43 = vmatpush1.bf16.xpose.msra.mxu0 0
    %44 = vmatprep.subr.bf16.mxu0 0
    %45 = vmatpush1.bf16.xpose.msra.mxu0 0
    %46 = vmatprep.subr.bf16.mxu0 0
    %47 = vmatpush1.bf16.xpose.msra.mxu0 0
    %48 = vmatprep.subr.bf16.mxu0 0
    %49 = vmatpush1.bf16.xpose.msra.mxu0 0
    %50 = vmatprep.subr.bf16.mxu0 0
    %51 = vmatpush1.bf16.xpose.msra.mxu0 0
    %52 = vmatprep.subr.bf16.mxu0 0
    %53 = vmatpush1.bf16.xpose.msra.mxu0 0
    %54 = vmatprep.subr.bf16.mxu0 0
    %55 = vmatpush1.bf16.xpose.msra.mxu0 0
    %56 = vmatprep.subr.bf16.mxu0 0
    %57 = vmatpush1.bf16.xpose.msra.mxu0 0
    %58 = vmatprep.subr.bf16.mxu0 0
    %59 = vmatpush1.bf16.xpose.msra.mxu0 0
    %60 = vmatprep.subr.bf16.mxu0 0
    %61 = vmatpush1.bf16.xpose.msra.mxu0 0
    %62 = vmatprep.subr.bf16.mxu0 0
    %63 = vmatpush1.bf16.xpose.msra.mxu0 0
    %64 = vmatprep.subr.bf16.mxu0 0
    %65 = vmatpush1.bf16.xpose.msra.mxu0 0
    %66 = vmatprep.mubr.bf16.mxu0 0
    %67 = vmatmul.mubr.bf16.gmra.mrb[0].mxu0 %v29
    %v68 = vpop.f32.mrb[0].mxu0
    %v69 = vadd.f32 0.0, %v68
    %v70 = vpop.f32.mrb[0].mxu0
    %v71 = vpop.f32.mrb[0].mxu0
    %v72 = vpop.f32.mrb[0].mxu0
    %73 = vdwg.mxu0
    %vm74 = vcmask 64512
    %v75 = vsel %vm74, %v69, -inf
    %76 = vmax.xlane.f32.xlu0 %v75
    %v77 = vpop.xlane.xlu0 %76
    %v78 = vsub.f32 %v69, %v77
    %v79 = vmul.f32 %v78, 10.0
    %v80 = vmul.f32 %v79, 1.442695
    %v81 = vpow.pop %v80
    %v82 = vsel %vm74, %v81, 0.0
    %83 = vadd.xlane.f32.xlu0 %v82
    %v84 = vpop.xlane.xlu0 %83
    %v85 = vlog2.pop %v84
    %v86 = vmul.f32 %v85, 0.6931472
    %v87 = vld [vmem:[%s2] sm:$0xff]
    %v88 = vmul.f32 %v77, 10.0
    %v89 = vadd.f32 %v88, %v86
    %v90 = vsub.f32 %v87, %v89
    %v91 = vmul.f32 %v69, 2.0
    %v92 = vld [vmem:[%s3] sm:$0xff]
    %94 = vset.pattern.permute.xlu0 0
    %95 = vperm.xlu0 %94, %v92
    %v96 = vpop.permute.xlu0 %95
    %v98 = vsub.f32 %v91, %v96
    %v99 = vld [vmem:[%s4] sm:$0x1]
    %v101 = vlaneseq
    %v102 = vshrl.u32 %v101, 7
    %v103 = vsub.s32 0, %v102
    %v104 = vrot.slane %v99, %v103
    %v106 = vsub.f32 %v98, %v104
    %v107 = vmul.f32 %v106, 1.442695
    %v108 = vpow.pop %v107
    %v109 = vsel %vm74, %v108, 0.0
    %110 = vadd.xlane.f32.xlu0 %v109
    %v111 = vpop.xlane.xlu0 %110
    %vm112 = vcmask 7168
    %v113 = vsel %vm112, %v90, 0.0
    %v114 = vrot.slane %v113, 4
    %v115 = vadd.f32 %v113, %v114
    %v116 = vrot.slane %v115, 2
    %v117 = vadd.f32 %v115, %v116
    %v118 = vrot.slane %v117, 1
    %v119 = vadd.f32 %v117, %v118
    %v120 = vsub.f32 0.0, %v119
    %v121 = vmul.f32 %v120, 0.125
    %vm122 = vcmask 0
    %123 = vst.msk [vmem:[#allocation2] sm:$0x1] %vm122, %v121
    %v124 = vrot.slane %v111, 4
    %v125 = vadd.f32 %v111, %v124
    %v126 = vrot.slane %v125, 2
    %v127 = vadd.f32 %v125, %v126
    %v128 = vrot.slane %v127, 1
    %v129 = vadd.f32 %v127, %v128
    %130 = vst.msk [vmem:[#allocation4] sm:$0x1] %vm122, %v129
    // Predicated region
    $region22: #{entity_contrastive_loss.1} parent=1 // pred_check
      _
    $region23: #{entity_contrastive_loss.1} parent=1 // pred_check_branch
      %132 = sbr.rel (0) target = $region25
    $region24: #{entity_contrastive_loss.1} parent=1 // pred_region
      %s134 = ssub.s32 16, 16
      %135 = vsyncadd [#allocation3], %s134
      %s137 = sshll.u32 [#allocation2], 4
      %s138 = int_to_ptr.vmem [resolvable:$true] %s137
      %140 = dma.vmem_to_hbm [thread:$0]  %s138, 16, %s5, [#allocation3]
    $region25: #{entity_contrastive_loss.1} parent=1 // pred_fallthru
      _
    // Predicated region
    $region26: #{entity_contrastive_loss.1} parent=1 // pred_check
      _
    $region27: #{entity_contrastive_loss.1} parent=1 // pred_check_branch
      %142 = sbr.rel (0) target = $region29
    $region28: #{entity_contrastive_loss.1} parent=1 // pred_region
      %s144 = ssub.s32 16, 16
      %145 = vsyncadd [#allocation5], %s144
      %s147 = sshll.u32 [#allocation4], 4
      %s148 = int_to_ptr.vmem [resolvable:$true] %s147
      %150 = dma.vmem_to_hbm [thread:$0]  %s148, 16, %s6, [#allocation5]
    $region29: #{entity_contrastive_loss.1} parent=1 // pred_fallthru
      _
    // Predicated region
    $region30: #{entity_contrastive_loss.1} parent=1 // pred_check
      _
    $region31: #{entity_contrastive_loss.1} parent=1 // pred_check_branch
      %152 = sbr.rel (0) target = $region33
    $region32: #{entity_contrastive_loss.1} parent=1 // pred_region
      %153 = dma.done [#allocation3], 16
    $region33: #{entity_contrastive_loss.1} parent=1 // pred_fallthru
      _
    // Predicated region
    $region34: #{entity_contrastive_loss.1} parent=1 // pred_check
      _
    $region35: #{entity_contrastive_loss.1} parent=1 // pred_check_branch
      %155 = sbr.rel (0) target = $region37
    $region36: #{entity_contrastive_loss.1} parent=1 // pred_region
      %156 = dma.done [#allocation5], 16
    $region37: #{entity_contrastive_loss.1} parent=1 // pred_fallthru
      _
    %157 = vsyncpa [#allocation3], 1
    %158 = vsyncpa [#allocation5], 1

</llo_original>
